<compile_context>
chip_gen: v7x
topology: tpu7x:2x2x1
jax: 0.10.0
libtpu: 0.0.40
codegen_flags: <defaults>
</compile_context>

<pallas_src>
import functools

import jax
import jax.numpy as jnp
from jax.experimental import pallas as pl
from jax.experimental.pallas import tpu as pltpu

OBS_DIM = 71
HIDDEN = 256

_HI = jax.lax.Precision.HIGHEST


def critic_kernel(x_ref, w1_ref, w2_ref, b2_ref, w3_ref, b3_ref, o_ref):
    """One batch tile of the critic MLP.

    x_ref : (tile_b, D_pad) f32   obs tile, batch-major; column OBS_DIM holds 1.0 (b1 fold)
    w1_ref: (H, D_pad)      bf16  fc1 weight (PyTorch (out, in) layout), b1 folded in
    w2_ref: (H, H)          bf16  fc2 weight
    b2_ref: (H, 1)          f32
    w3_ref: (H, 1)          f32   value-head weight as a column
    b3_ref: (1, 1)          f32   value-head bias (SMEM scalar)
    o_ref : (1, tile_b)     f32   lane-dense value row
    """
    # In-kernel relayout of the streamed operand: (tile_b, D_pad) -> (D_pad, tile_b)
    # on the XLU, then a bf16 cast for the MXU.  This removes the wrapper-side
    # pad/cast/transpose pass (an extra HBM round trip + XLA launch) over x.
    x_t = x_ref[...].T.astype(jnp.bfloat16)                         # (D_pad, tile_b)

    # fc1 (+ folded b1): bf16 MXU matmul, f32 accumulation.  ReLU is fused with
    # the bf16 downcast so the f32 h1 intermediate isn't re-materialized.
    h1 = jnp.dot(w1_ref[...], x_t, preferred_element_type=jnp.float32)
    h1 = jnp.maximum(h1, 0.0).astype(jnp.bfloat16)                  # (H, tile_b)

    # fc2: bf16 MXU matmul, f32 accumulation; bias + ReLU in f32 on the VPU.
    h2 = jnp.dot(w2_ref[...], h1, preferred_element_type=jnp.float32)
    h2 = jnp.maximum(h2 + b2_ref[...], 0.0)                         # (H, tile_b)

    # Value head (N=1): keep it off the MXU.  VPU multiply against the broadcast
    # w3 column + cross-sublane reduce gives one value per batch lane, feeding a
    # lane-dense (1, tile_b) store (no masked 1-lane vst).
    v = jnp.sum(h2 * w3_ref[...], axis=0, keepdims=True)            # (1, tile_b)
    o_ref[...] = (v + b3_ref[0, 0]).astype(o_ref.dtype)


@functools.partial(jax.jit, static_argnames=("tile_b",))
def _critic_forward_impl(x, w1, b1, w2, b2, w3, b3, *, tile_b):
    B, D = x.shape
    H = w1.shape[0]
    assert tile_b % 128 == 0, "batch tile must be lane aligned"
    assert H % 128 == 0, "hidden size must be lane aligned"

    d_pad = pl.cdiv(D + 1, 128) * 128      # +1 for the b1-fold ones column; 71+1 -> 128
    b_pad = pl.cdiv(B, tile_b) * tile_b    # ragged batch -> zero padded

    # x stays f32 and batch-major: only append the b1-fold ones column and zero-pad.
    # (bf16 cast + transpose are done in-kernel.)  Padded batch rows are all-zero
    # (ones column included), produce finite garbage, and are sliced off below.
    x_aug = jnp.concatenate([x, jnp.ones((B, 1), x.dtype)], axis=1)
    x_p = jnp.pad(x_aug, ((0, b_pad - B), (0, d_pad - (D + 1))))    # (b_pad, d_pad) f32

    # W1 with b1 folded into the ones column (b1 rides in bf16; exact here since
    # the module initializes b1 = 0, and within bf16 rounding otherwise).
    w1_aug = jnp.concatenate([w1, b1.reshape(H, 1)], axis=1)        # (H, D+1)
    w1_p = jnp.pad(w1_aug, ((0, 0), (0, d_pad - (D + 1)))).astype(jnp.bfloat16)
    w2_b = w2.astype(jnp.bfloat16)
    b2_c = b2.reshape(H, 1).astype(jnp.float32)
    w3_c = w3.reshape(H, 1).astype(jnp.float32)
    b3_s = b3.reshape(1, 1).astype(jnp.float32)

    grid = (b_pad // tile_b,)
    out = pl.pallas_call(
        critic_kernel,
        out_shape=jax.ShapeDtypeStruct((1, b_pad), jnp.float32),
        grid=grid,
        in_specs=[
            pl.BlockSpec((tile_b, d_pad), lambda i: (i, 0)),    # x tile (streamed)
            pl.BlockSpec((H, d_pad), lambda i: (0, 0)),         # W1 (+b1) resident
            pl.BlockSpec((H, H), lambda i: (0, 0)),             # W2 resident
            pl.BlockSpec((H, 1), lambda i: (0, 0)),             # b2
            pl.BlockSpec((H, 1), lambda i: (0, 0)),             # w3 column
            pl.BlockSpec(memory_space=pltpu.MemorySpace.SMEM),  # b3 scalar
        ],
        out_specs=pl.BlockSpec((1, tile_b), lambda i: (0, i)),
        compiler_params=pltpu.CompilerParams(
            dimension_semantics=("parallel",),     # batch tiles are independent
            vmem_limit_bytes=32 * 1024 * 1024,     # headroom over v5e's 16 MiB default
        ),
    )(x_p, w1_p, w2_b, b2_c, w3_c, b3_s)

    return out[0, :B].reshape(B, 1)


def _pick_tile_b(batch, max_tile_b):
    """Lane-aligned batch tile.  Keep >= 2 grid steps whenever the batch allows it
    so the 'parallel' batch axis spans both TensorCores on v7x."""
    half = pl.cdiv(pl.cdiv(batch, 2), 128) * 128
    return int(min(max_tile_b, max(128, half)))


def critic_forward(x, w1, b1, w2, b2, w3, b3, *, max_tile_b=2048):
    """value = fc3(relu(fc2(relu(fc1(x))))) with PyTorch-layout params.

    x : (B, obs_dim) f32
    w1: (H, obs_dim), b1: (H,)
    w2: (H, H),       b2: (H,)
    w3: (1, H),       b3: (1,)
    """
    tile_b = _pick_tile_b(x.shape[0], max_tile_b)
    return _critic_forward_impl(x, w1, b1, w2, b2, w3, b3, tile_b=tile_b)


def xavier_uniform(key, out_features, in_features):
    """Matches torch.nn.init.xavier_uniform_ for an (out, in) Linear weight."""
    bound = (6.0 / (in_features + out_features)) ** 0.5
    return jax.random.uniform(
        key, (out_features, in_features), dtype=jnp.float32,
        minval=-bound, maxval=bound,
    )


def init_critic_params(key, obs_dim=OBS_DIM, hidden=HIDDEN):
    """PyTorch nn.Linear layout: weight (out, in), bias (out,)."""
    k1, k2, k3 = jax.random.split(key, 3)
    w1 = xavier_uniform(k1, hidden, obs_dim)
    w2 = xavier_uniform(k2, hidden, hidden)
    w3 = xavier_uniform(k3, 1, hidden)
    b1 = jnp.zeros((hidden,), jnp.float32)
    b2 = jnp.zeros((hidden,), jnp.float32)
    b3 = jnp.zeros((1,), jnp.float32)
    return w1, b1, w2, b2, w3, b3


def critic_reference_f32(x, w1, b1, w2, b2, w3, b3):
    """Pure f32 forward (the PyTorch module's semantics)."""
    h1 = jnp.maximum(jnp.matmul(x, w1.T, precision=_HI) + b1, 0.0)
    h2 = jnp.maximum(jnp.matmul(h1, w2.T, precision=_HI) + b2, 0.0)
    return jnp.matmul(h2, w3.T, precision=_HI) + b3


def critic_reference_mixed(x, w1, b1, w2, b2, w3, b3):
    """Reference mirroring the kernel's bf16-input / f32-accumulate policy."""
    bf = lambda a: a.astype(jnp.bfloat16).astype(jnp.float32)
    h1 = jnp.maximum(jnp.matmul(bf(x), bf(w1).T, precision=_HI) + b1, 0.0)
    h2 = jnp.maximum(jnp.matmul(bf(h1), bf(w2).T, precision=_HI) + b2, 0.0)
    return jnp.matmul(h2, w3.T, precision=_HI) + b3


if __name__ == "__main__":
    key = jax.random.PRNGKey(0)
    k_params, k_x_small, k_x_big = jax.random.split(key, 3)

    params = init_critic_params(k_params)

    # Two cases: a tiny batch (single-tile grid) and a ragged medium batch that
    # pads to 2 tiles of 256 -> 2 parallel grid steps (feeds both TCs on v7x).
    for batch, k_x in ((5, k_x_small), (300, k_x_big)):
        x = jax.random.normal(k_x, (batch, OBS_DIM), dtype=jnp.float32)

        value = jax.block_until_ready(critic_forward(x, *params))
        assert value.shape == (batch, 1), value.shape

        ref_mixed = critic_reference_mixed(x, *params)
        ref_f32 = critic_reference_f32(x, *params)
        err_mixed = float(jnp.max(jnp.abs(value - ref_mixed)))
        err_f32 = float(jnp.max(jnp.abs(value - ref_f32)))
        assert jnp.allclose(value, ref_mixed, atol=2e-4, rtol=2e-4), err_mixed
        assert jnp.allclose(value, ref_f32, atol=5e-2, rtol=5e-2), err_f32

    print("KERNEL_OK")
</pallas_src>

<mosaic_0001>
module attributes {stable_mosaic.version = 11 : i64} {
  func.func @critic_kernel(%arg0: i32, %arg1: memref<128x128xf32, #tpu.memory_space<vmem>>, %arg2: memref<256x128xbf16, #tpu.memory_space<vmem>>, %arg3: memref<256x256xbf16, #tpu.memory_space<vmem>>, %arg4: memref<256x1xf32, #tpu.memory_space<vmem>>, %arg5: memref<256x1xf32, #tpu.memory_space<vmem>>, %arg6: memref<1x1xf32, #tpu.memory_space<smem>>, %arg7: memref<1x128xf32, #tpu.memory_space<vmem>>) attributes {dimension_semantics = [#tpu.dimension_semantics<parallel>], iteration_bounds = array<i64: 1>, scalar_prefetch = 0 : i64, scratch_operands = 0 : i64, tpu.core_type = #tpu.core_type<tc>, window_params = [{transform_indices = @transform_0, window_bounds = array<i64: 128, 128>}, {pipeline_mode = #tpu.pipeline_mode<synchronous>, transform_indices = @transform_1, window_bounds = array<i64: 256, 128>}, {pipeline_mode = #tpu.pipeline_mode<synchronous>, transform_indices = @transform_2, window_bounds = array<i64: 256, 256>}, {pipeline_mode = #tpu.pipeline_mode<synchronous>, transform_indices = @transform_3, window_bounds = array<i64: 256, 1>}, {pipeline_mode = #tpu.pipeline_mode<synchronous>, transform_indices = @transform_4, window_bounds = array<i64: 256, 1>}, {transform_indices = @transform_5, window_bounds = array<i64: 1, 1>}, {transform_indices = @transform_6, window_bounds = array<i64: 1, 128>}]} {
    %c0 = arith.constant 0 : index
    %c0_0 = arith.constant 0 : index
    %0 = vector.load %arg1[%c0, %c0_0] : memref<128x128xf32, #tpu.memory_space<vmem>>, vector<128x128xf32>
    %1 = tpu.transpose %0, [1, 0] : vector<128x128xf32> -> vector<128x128xf32>
    %2 = arith.truncf %1 : vector<128x128xf32> to vector<128x128xbf16>
    %c0_1 = arith.constant 0 : index
    %c0_2 = arith.constant 0 : index
    %3 = vector.load %arg2[%c0_1, %c0_2] : memref<256x128xbf16, #tpu.memory_space<vmem>>, vector<256x128xbf16>
    %cst = arith.constant dense<0.000000e+00> : vector<256x128xf32>
    %4 = tpu.matmul %3, %2, %cst {dimension_numbers = #tpu.dot_dimension_numbers<[1], [0], [0], [1], [0, 0, 1, 1], [], []>} : vector<256x128xbf16>, vector<128x128xbf16>, vector<256x128xf32> -> vector<256x128xf32>
    %cst_3 = arith.constant 0.000000e+00 : f32
    %5 = vector.broadcast %cst_3 : f32 to vector<256x128xf32>
    %6 = arith.maximumf %4, %5 : vector<256x128xf32>
    %7 = arith.truncf %6 : vector<256x128xf32> to vector<256x128xbf16>
    %c0_4 = arith.constant 0 : index
    %c0_5 = arith.constant 0 : index
    %8 = vector.load %arg3[%c0_4, %c0_5] : memref<256x256xbf16, #tpu.memory_space<vmem>>, vector<256x256xbf16>
    %cst_6 = arith.constant dense<0.000000e+00> : vector<256x128xf32>
    %9 = tpu.matmul %8, %7, %cst_6 {dimension_numbers = #tpu.dot_dimension_numbers<[1], [0], [0], [1], [0, 0, 1, 1], [], []>} : vector<256x256xbf16>, vector<256x128xbf16>, vector<256x128xf32> -> vector<256x128xf32>
    %c0_7 = arith.constant 0 : index
    %c0_8 = arith.constant 0 : index
    %10 = vector.load %arg4[%c0_7, %c0_8] : memref<256x1xf32, #tpu.memory_space<vmem>>, vector<256x1xf32>
    %11 = vector.broadcast %10 : vector<256x1xf32> to vector<256x128xf32>
    %12 = arith.addf %9, %11 : vector<256x128xf32>
    %cst_9 = arith.constant 0.000000e+00 : f32
    %13 = vector.broadcast %cst_9 : f32 to vector<256x128xf32>
    %14 = arith.maximumf %12, %13 : vector<256x128xf32>
    %c0_10 = arith.constant 0 : index
    %c0_11 = arith.constant 0 : index
    %15 = vector.load %arg5[%c0_10, %c0_11] : memref<256x1xf32, #tpu.memory_space<vmem>>, vector<256x1xf32>
    %16 = vector.broadcast %15 : vector<256x1xf32> to vector<256x128xf32>
    %17 = arith.mulf %14, %16 : vector<256x128xf32>
    %cst_12 = arith.constant dense<0.000000e+00> : vector<128xf32>
    %18 = vector.multi_reduction <add>, %17, %cst_12 [0] : vector<256x128xf32> to vector<128xf32>
    %19 = vector.shape_cast %18 : vector<128xf32> to vector<1x128xf32>
    %c0_13 = arith.constant 0 : index
    %c0_14 = arith.constant 0 : index
    %20 = memref.load %arg6[%c0_13, %c0_14] : memref<1x1xf32, #tpu.memory_space<smem>>
    %21 = vector.broadcast %20 : f32 to vector<1x128xf32>
    %22 = arith.addf %19, %21 : vector<1x128xf32>
    %c0_15 = arith.constant 0 : index
    %c0_16 = arith.constant 0 : index
    %23 = vector.load %arg7[%c0_15, %c0_16] : memref<1x128xf32, #tpu.memory_space<vmem>>, vector<1x128xf32>
    tpu.vector_store %arg7[%c0_15, %c0_16], %22 {strides = array<i32>} : memref<1x128xf32, #tpu.memory_space<vmem>>, vector<1x128xf32>,
    return
  }
  func.func @transform_0(%arg0: i32) -> (i32, i32) {
    %c0_i32 = arith.constant 0 : i32
    %c0_i32_0 = arith.constant 0 : i32
    return %arg0, %c0_i32 : i32, i32
  }
  func.func @transform_1(%arg0: i32) -> (i32, i32) {
    %c0_i32 = arith.constant 0 : i32
    %c0_i32_0 = arith.constant 0 : i32
    %c0_i32_1 = arith.constant 0 : i32
    return %c0_i32, %c0_i32_0 : i32, i32
  }
  func.func @transform_2(%arg0: i32) -> (i32, i32) {
    %c0_i32 = arith.constant 0 : i32
    %c0_i32_0 = arith.constant 0 : i32
    %c0_i32_1 = arith.constant 0 : i32
    return %c0_i32, %c0_i32_0 : i32, i32
  }
  func.func @transform_3(%arg0: i32) -> (i32, i32) {
    %c0_i32 = arith.constant 0 : i32
    %c0_i32_0 = arith.constant 0 : i32
    %c0_i32_1 = arith.constant 0 : i32
    return %c0_i32, %c0_i32_0 : i32, i32
  }
  func.func @transform_4(%arg0: i32) -> (i32, i32) {
    %c0_i32 = arith.constant 0 : i32
    %c0_i32_0 = arith.constant 0 : i32
    %c0_i32_1 = arith.constant 0 : i32
    return %c0_i32, %c0_i32_0 : i32, i32
  }
  func.func @transform_5(%arg0: i32) -> (i32, i32) {
    %c0_i32 = arith.constant 0 : i32
    %c0_i32_0 = arith.constant 0 : i32
    %c0_i32_1 = arith.constant 0 : i32
    return %c0_i32, %c0_i32_0 : i32, i32
  }
  func.func @transform_6(%arg0: i32) -> (i32, i32) {
    %c0_i32 = arith.constant 0 : i32
    %c0_i32_0 = arith.constant 0 : i32
    return %c0_i32, %arg0 : i32, i32
  }
}

</mosaic_0001>

<llo_original>
// kernel: _critic_forward_impl.1
$region0: #{_critic_forward_impl.1}
  #allocation0 [shape = 'u32[]', space=smem, size = 0x4, offset = 0x4, fixed_abs, tag = 'smem constant byte address 0x4 - core index']
  #allocation1 [shape = 'u32[144,128]{1,0:T(1,128)}', space=vmem, size = 0x12000, scoped, tag = 'internal scratch']
  #allocation2 [shape = 'f32[1,1]{1,0:T(1,128)S(6)}', space=smem, size = 0x200, scoped, tag = 'scoped memory for _critic_forward_impl.1']
  %s0 = inlined_call_operand.vmem [shape: f32[128,128], index: 0, kind: input, shape index: {}]
  %s1 = inlined_call_operand.vmem [shape: bf16[256,128], index: 1, kind: input, shape index: {}]
  %s2 = inlined_call_operand.vmem [shape: bf16[256,256], index: 2, kind: input, shape index: {}]
  %s3 = inlined_call_operand.vmem [shape: f32[256,1], index: 3, kind: input, shape index: {}]
  %s4 = inlined_call_operand.vmem [shape: f32[256,1], index: 4, kind: input, shape index: {}]
  %s5 = inlined_call_operand.<no memory space> [shape: f32[1,1], index: 5, kind: input, shape index: {}]
  %s6 = inlined_call_operand.vmem [shape: f32[1,128], index: 6, kind: output, shape index: {}]
  %s7 = sld [smem:[#allocation0]]
  $region34: #{_critic_forward_impl.1} parent=0
    _
  %s9 = ssub.s32 1, %s7
  %s10 = scalar_select 0, %s9, %s7
  %11 = sst [smem:[#allocation2]] %s5
  // Predicated region
  $region2: #{_critic_forward_impl.1} parent=0 // pred_check
    _
  $region3: #{_critic_forward_impl.1} parent=0 // pred_check_branch
    %13 = sbr.rel (0) target = $region5
  $region4: #{_critic_forward_impl.1} parent=0 // pred_region
    _
  $region5: #{_critic_forward_impl.1} parent=0 // pred_fallthru
    _
  // Predicated region
  $region6: #{_critic_forward_impl.1} parent=0 // pred_check
    _
  $region7: #{_critic_forward_impl.1} parent=0 // pred_check_branch
    %15 = sbr.rel (0) target = $region9
  $region8: #{_critic_forward_impl.1} parent=0 // pred_region
    _
  $region9: #{_critic_forward_impl.1} parent=0 // pred_fallthru
    _
  // Predicated region
  $region10: #{_critic_forward_impl.1} parent=0 // pred_check
    _
  $region11: #{_critic_forward_impl.1} parent=0 // pred_check_branch
    %17 = sbr.rel (0) target = $region13
  $region12: #{_critic_forward_impl.1} parent=0 // pred_region
    _
  $region13: #{_critic_forward_impl.1} parent=0 // pred_fallthru
    _
  // Predicated region
  $region14: #{_critic_forward_impl.1} parent=0 // pred_check
    _
  $region15: #{_critic_forward_impl.1} parent=0 // pred_check_branch
    %19 = sbr.rel (0) target = $region17
  $region16: #{_critic_forward_impl.1} parent=0 // pred_region
    _
  $region17: #{_critic_forward_impl.1} parent=0 // pred_fallthru
    _
  // Predicated region
  $region18: #{_critic_forward_impl.1} parent=0 // pred_check
    _
  $region19: #{_critic_forward_impl.1} parent=0 // pred_check_branch
    %21 = sbr.rel (0) target = $region21
  $region20: #{_critic_forward_impl.1} parent=0 // pred_region
    _
  $region21: #{_critic_forward_impl.1} parent=0 // pred_fallthru
    _
  // Predicated region
  $region22: #{_critic_forward_impl.1} parent=0 // pred_check
    _
  $region23: #{_critic_forward_impl.1} parent=0 // pred_check_branch
    %23 = sbr.rel (0) target = $region25
  $region24: #{_critic_forward_impl.1} parent=0 // pred_region
    _
  $region25: #{_critic_forward_impl.1} parent=0 // pred_fallthru
    _
  %v25 = vld [vmem:[%s0] sm:$0xff]
  %v26 = vld [vmem:[%s0 + $0x8] sm:$0xff]
  %v27 = vld [vmem:[%s0 + $0x10] sm:$0xff]
  %v28 = vld [vmem:[%s0 + $0x18] sm:$0xff]
  %v29 = vld [vmem:[%s0 + $0x20] sm:$0xff]
  %v30 = vld [vmem:[%s0 + $0x28] sm:$0xff]
  %v31 = vld [vmem:[%s0 + $0x30] sm:$0xff]
  %v32 = vld [vmem:[%s0 + $0x38] sm:$0xff]
  %v33 = vld [vmem:[%s0 + $0x40] sm:$0xff]
  %v34 = vld [vmem:[%s0 + $0x48] sm:$0xff]
  %v35 = vld [vmem:[%s0 + $0x50] sm:$0xff]
  %v36 = vld [vmem:[%s0 + $0x58] sm:$0xff]
  %v37 = vld [vmem:[%s0 + $0x60] sm:$0xff]
  %v38 = vld [vmem:[%s0 + $0x68] sm:$0xff]
  %v39 = vld [vmem:[%s0 + $0x70] sm:$0xff]
  %v40 = vld [vmem:[%s0 + $0x78] sm:$0xff]
  %41 = vxpose.xlu0.b32.start [1/16] %v25, 128
  %42 = vxpose.xlu0.b32.cont [2/16] %v26, 128
  %43 = vxpose.xlu0.b32.cont [3/16] %v27, 128
  %44 = vxpose.xlu0.b32.cont [4/16] %v28, 128
  %45 = vxpose.xlu0.b32.cont [5/16] %v29, 128
  %46 = vxpose.xlu0.b32.cont [6/16] %v30, 128
  %47 = vxpose.xlu0.b32.cont [7/16] %v31, 128
  %48 = vxpose.xlu0.b32.cont [8/16] %v32, 128
  %49 = vxpose.xlu0.b32.cont [9/16] %v33, 128
  %50 = vxpose.xlu0.b32.cont [10/16] %v34, 128
  %51 = vxpose.xlu0.b32.cont [11/16] %v35, 128
  %52 = vxpose.xlu0.b32.cont [12/16] %v36, 128
  %53 = vxpose.xlu0.b32.cont [13/16] %v37, 128
  %54 = vxpose.xlu0.b32.cont [14/16] %v38, 128
  %55 = vxpose.xlu0.b32.cont [15/16] %v39, 128
  %56 = vxpose.xlu0.b32.end [16/16] %v40, 128
  %v57 = vpop.trf.xlu0
  %v58 = vpop.trf.xlu0
  %v59 = vpop.trf.xlu0
  %v60 = vpop.trf.xlu0
  %v61 = vpop.trf.xlu0
  %v62 = vpop.trf.xlu0
  %v63 = vpop.trf.xlu0
  %v64 = vpop.trf.xlu0
  %v65 = vpop.trf.xlu0
  %v66 = vpop.trf.xlu0
  %v67 = vpop.trf.xlu0
  %v68 = vpop.trf.xlu0
  %v69 = vpop.trf.xlu0
  %v70 = vpop.trf.xlu0
  %v71 = vpop.trf.xlu0
  %v72 = vpop.trf.xlu0
  %v73 = vpack.c.bf16 %v58, %v57
  %v74 = vpack.c.bf16 %v60, %v59
  %v75 = vpack.c.bf16 %v62, %v61
  %v76 = vpack.c.bf16 %v64, %v63
  %v77 = vpack.c.bf16 %v66, %v65
  %v78 = vpack.c.bf16 %v68, %v67
  %v79 = vpack.c.bf16 %v70, %v69
  %v80 = vpack.c.bf16 %v72, %v71
  %v81 = vld [vmem:[%s1] sm:$0xf]
  %v82 = vld [vmem:[%s1 + $0x4] sm:$0xf]
  %v83 = vld [vmem:[%s1 + $0x8] sm:$0xf]
  %v84 = vld [vmem:[%s1 + $0xc] sm:$0xf]
  %v85 = vld [vmem:[%s1 + $0x10] sm:$0xf]
  %v86 = vld [vmem:[%s1 + $0x14] sm:$0xf]
  %v87 = vld [vmem:[%s1 + $0x18] sm:$0xf]
  %v88 = vld [vmem:[%s1 + $0x1c] sm:$0xf]
  %v89 = vld [vmem:[%s1 + $0x20] sm:$0xf]
  %v90 = vld [vmem:[%s1 + $0x24] sm:$0xf]
  %v91 = vld [vmem:[%s1 + $0x28] sm:$0xf]
  %v92 = vld [vmem:[%s1 + $0x2c] sm:$0xf]
  %v93 = vld [vmem:[%s1 + $0x30] sm:$0xf]
  %v94 = vld [vmem:[%s1 + $0x34] sm:$0xf]
  %v95 = vld [vmem:[%s1 + $0x38] sm:$0xf]
  %v96 = vld [vmem:[%s1 + $0x3c] sm:$0xf]
  %v97 = vld [vmem:[%s1 + $0x40] sm:$0xf]
  %v98 = vld [vmem:[%s1 + $0x44] sm:$0xf]
  %v99 = vld [vmem:[%s1 + $0x48] sm:$0xf]
  %v100 = vld [vmem:[%s1 + $0x4c] sm:$0xf]
  %v101 = vld [vmem:[%s1 + $0x50] sm:$0xf]
  %v102 = vld [vmem:[%s1 + $0x54] sm:$0xf]
  %v103 = vld [vmem:[%s1 + $0x58] sm:$0xf]
  %v104 = vld [vmem:[%s1 + $0x5c] sm:$0xf]
  %v105 = vld [vmem:[%s1 + $0x60] sm:$0xf]
  %v106 = vld [vmem:[%s1 + $0x64] sm:$0xf]
  %v107 = vld [vmem:[%s1 + $0x68] sm:$0xf]
  %v108 = vld [vmem:[%s1 + $0x6c] sm:$0xf]
  %v109 = vld [vmem:[%s1 + $0x70] sm:$0xf]
  %v110 = vld [vmem:[%s1 + $0x74] sm:$0xf]
  %v111 = vld [vmem:[%s1 + $0x78] sm:$0xf]
  %v112 = vld [vmem:[%s1 + $0x7c] sm:$0xf]
  %v145 = vunpack.c.l.b16 %v81
  %v146 = vunpack.c.l.b16 %v82
  %v147 = vunpack.c.l.b16 %v83
  %v148 = vunpack.c.l.b16 %v84
  %v149 = vunpack.c.l.b16 %v85
  %v150 = vunpack.c.l.b16 %v86
  %v151 = vunpack.c.l.b16 %v87
  %v152 = vunpack.c.l.b16 %v88
  %v153 = vunpack.c.l.b16 %v89
  %v154 = vunpack.c.l.b16 %v90
  %v155 = vunpack.c.l.b16 %v91
  %v156 = vunpack.c.l.b16 %v92
  %v157 = vunpack.c.l.b16 %v93
  %v158 = vunpack.c.l.b16 %v94
  %v159 = vunpack.c.l.b16 %v95
  %v160 = vunpack.c.l.b16 %v96
  %v161 = vunpack.c.l.b16 %v97
  %v162 = vunpack.c.l.b16 %v98
  %v163 = vunpack.c.l.b16 %v99
  %v164 = vunpack.c.l.b16 %v100
  %v165 = vunpack.c.l.b16 %v101
  %v166 = vunpack.c.l.b16 %v102
  %v167 = vunpack.c.l.b16 %v103
  %v168 = vunpack.c.l.b16 %v104
  %v169 = vunpack.c.l.b16 %v105
  %v170 = vunpack.c.l.b16 %v106
  %v171 = vunpack.c.l.b16 %v107
  %v172 = vunpack.c.l.b16 %v108
  %v173 = vunpack.c.l.b16 %v109
  %v174 = vunpack.c.l.b16 %v110
  %v175 = vunpack.c.l.b16 %v111
  %v176 = vunpack.c.l.b16 %v112
  %v177 = vpack.c.b16 %v146, %v145
  %v178 = vpack.c.b16 %v148, %v147
  %v179 = vpack.c.b16 %v150, %v149
  %v180 = vpack.c.b16 %v152, %v151
  %v181 = vpack.c.b16 %v154, %v153
  %v182 = vpack.c.b16 %v156, %v155
  %v183 = vpack.c.b16 %v158, %v157
  %v184 = vpack.c.b16 %v160, %v159
  %v185 = vpack.c.b16 %v162, %v161
  %v186 = vpack.c.b16 %v164, %v163
  %v187 = vpack.c.b16 %v166, %v165
  %v188 = vpack.c.b16 %v168, %v167
  %v189 = vpack.c.b16 %v170, %v169
  %v190 = vpack.c.b16 %v172, %v171
  %v191 = vpack.c.b16 %v174, %v173
  %v192 = vpack.c.b16 %v176, %v175
  %209 = vmatprep.subr.bf16.mxu0 0
  %210 = vmatpush1.bf16.msra.mxu0 %v73
  %211 = vmatprep.subr.bf16.mxu0 0
  %212 = vmatpush1.bf16.msra.mxu0 %v74
  %213 = vmatprep.subr.bf16.mxu0 0
  %214 = vmatpush1.bf16.msra.mxu0 %v75
  %215 = vmatprep.subr.bf16.mxu0 0
  %216 = vmatpush1.bf16.msra.mxu0 %v76
  %217 = vmatprep.subr.bf16.mxu0 0
  %218 = vmatpush1.bf16.msra.mxu0 %v77
  %219 = vmatprep.subr.bf16.mxu0 0
  %220 = vmatpush1.bf16.msra.mxu0 %v78
  %221 = vmatprep.subr.bf16.mxu0 0
  %222 = vmatpush1.bf16.msra.mxu0 %v79
  %223 = vmatprep.subr.bf16.mxu0 0
  %224 = vmatpush1.bf16.msra.mxu0 %v80
  %225 = vmatprep.subr.bf16.mxu0 0
  %226 = vmatpush1.bf16.msra.mxu0 0
  %227 = vmatprep.subr.bf16.mxu0 0
  %228 = vmatpush1.bf16.msra.mxu0 0
  %229 = vmatprep.subr.bf16.mxu0 0
  %230 = vmatpush1.bf16.msra.mxu0 0
  %231 = vmatprep.subr.bf16.mxu0 0
  %232 = vmatpush1.bf16.msra.mxu0 0
  %233 = vmatprep.subr.bf16.mxu0 0
  %234 = vmatpush1.bf16.msra.mxu0 0
  %235 = vmatprep.subr.bf16.mxu0 0
  %236 = vmatpush1.bf16.msra.mxu0 0
  %237 = vmatprep.subr.bf16.mxu0 0
  %238 = vmatpush1.bf16.msra.mxu0 0
  %239 = vmatprep.subr.bf16.mxu0 0
  %240 = vmatpush1.bf16.msra.mxu0 0
  %241 = vmatprep.mubr.bf16.mxu0 0
  %242 = vmatmul.mubr.bf16.gmra.mrb[0].mxu0 %v177
  %v243 = vpop.f32.mrb[0].mxu0
  %v244 = vadd.f32 0.0, %v243
  %v245 = vpop.f32.mrb[0].mxu0
  %v246 = vpop.f32.mrb[0].mxu0
  %v247 = vadd.f32 0.0, %v246
  %v248 = vpop.f32.mrb[0].mxu0
  %249 = vmatprep.mubr.bf16.mxu0 0
  %250 = vmatmul.mubr.bf16.gmra.mrb[0].mxu0 %v178
  %v251 = vpop.f32.mrb[0].mxu0
  %v252 = vadd.f32 0.0, %v251
  %v253 = vpop.f32.mrb[0].mxu0
  %v254 = vpop.f32.mrb[0].mxu0
  %v255 = vadd.f32 0.0, %v254
  %v256 = vpop.f32.mrb[0].mxu0
  %257 = vmatprep.mubr.bf16.mxu0 0
  %258 = vmatmul.mubr.bf16.gmra.mrb[0].mxu0 %v179
  %v259 = vpop.f32.mrb[0].mxu0
  %v260 = vadd.f32 0.0, %v259
  %v261 = vpop.f32.mrb[0].mxu0
  %v262 = vpop.f32.mrb[0].mxu0
  %v263 = vadd.f32 0.0, %v262
  %v264 = vpop.f32.mrb[0].mxu0
  %265 = vmatprep.mubr.bf16.mxu0 0
  %266 = vmatmul.mubr.bf16.gmra.mrb[0].mxu0 %v180
  %v267 = vpop.f32.mrb[0].mxu0
  %v268 = vadd.f32 0.0, %v267
  %v269 = vpop.f32.mrb[0].mxu0
  %v270 = vpop.f32.mrb[0].mxu0
  %v271 = vadd.f32 0.0, %v270
  %v272 = vpop.f32.mrb[0].mxu0
  %273 = vmatprep.mubr.bf16.mxu0 0
  %274 = vmatmul.mubr.bf16.gmra.mrb[0].mxu0 %v181
  %v275 = vpop.f32.mrb[0].mxu0
  %v276 = vadd.f32 0.0, %v275
  %v277 = vpop.f32.mrb[0].mxu0
  %v278 = vpop.f32.mrb[0].mxu0
  %v279 = vadd.f32 0.0, %v278
  %v280 = vpop.f32.mrb[0].mxu0
  %281 = vmatprep.mubr.bf16.mxu0 0
  %282 = vmatmul.mubr.bf16.gmra.mrb[0].mxu0 %v182
  %v283 = vpop.f32.mrb[0].mxu0
  %v284 = vadd.f32 0.0, %v283
  %v285 = vpop.f32.mrb[0].mxu0
  %v286 = vpop.f32.mrb[0].mxu0
  %v287 = vadd.f32 0.0, %v286
  %v288 = vpop.f32.mrb[0].mxu0
  %289 = vmatprep.mubr.bf16.mxu0 0
  %290 = vmatmul.mubr.bf16.gmra.mrb[0].mxu0 %v183
  %v291 = vpop.f32.mrb[0].mxu0
  %v292 = vadd.f32 0.0, %v291
  %v293 = vpop.f32.mrb[0].mxu0
  %v294 = vpop.f32.mrb[0].mxu0
  %v295 = vadd.f32 0.0, %v294
  %v296 = vpop.f32.mrb[0].mxu0
  %297 = vmatprep.mubr.bf16.mxu0 0
  %298 = vmatmul.mubr.bf16.gmra.mrb[0].mxu0 %v184
  %v299 = vpop.f32.mrb[0].mxu0
  %v300 = vadd.f32 0.0, %v299
  %v301 = vpop.f32.mrb[0].mxu0
  %v302 = vpop.f32.mrb[0].mxu0
  %v303 = vadd.f32 0.0, %v302
  %v304 = vpop.f32.mrb[0].mxu0
  %305 = vmatprep.mubr.bf16.mxu0 0
  %306 = vmatmul.mubr.bf16.gmra.mrb[0].mxu0 %v185
  %v307 = vpop.f32.mrb[0].mxu0
  %v308 = vadd.f32 0.0, %v307
  %v309 = vpop.f32.mrb[0].mxu0
  %v310 = vpop.f32.mrb[0].mxu0
  %v311 = vadd.f32 0.0, %v310
  %v312 = vpop.f32.mrb[0].mxu0
  %313 = vmatprep.mubr.bf16.mxu0 0
  %314 = vmatmul.mubr.bf16.gmra.mrb[0].mxu0 %v186
  %v315 = vpop.f32.mrb[0].mxu0
  %v316 = vadd.f32 0.0, %v315
  %v317 = vpop.f32.mrb[0].mxu0
  %v318 = vpop.f32.mrb[0].mxu0
  %v319 = vadd.f32 0.0, %v318
  %v320 = vpop.f32.mrb[0].mxu0
  %321 = vmatprep.mubr.bf16.mxu0 0
  %322 = vmatmul.mubr.bf16.gmra.mrb[0].mxu0 %v187
  %v323 = vpop.f32.mrb[0].mxu0
  %v324 = vadd.f32 0.0, %v323
  %v325 = vpop.f32.mrb[0].mxu0
  %v326 = vpop.f32.mrb[0].mxu0
  %v327 = vadd.f32 0.0, %v326
  %v328 = vpop.f32.mrb[0].mxu0
  %329 = vmatprep.mubr.bf16.mxu0 0
  %330 = vmatmul.mubr.bf16.gmra.mrb[0].mxu0 %v188
  %v331 = vpop.f32.mrb[0].mxu0
  %v332 = vadd.f32 0.0, %v331
  %v333 = vpop.f32.mrb[0].mxu0
  %v334 = vpop.f32.mrb[0].mxu0
  %v335 = vadd.f32 0.0, %v334
  %v336 = vpop.f32.mrb[0].mxu0
  %337 = vmatprep.mubr.bf16.mxu0 0
  %338 = vmatmul.mubr.bf16.gmra.mrb[0].mxu0 %v189
  %v339 = vpop.f32.mrb[0].mxu0
  %v340 = vadd.f32 0.0, %v339
  %v341 = vpop.f32.mrb[0].mxu0
  %v342 = vpop.f32.mrb[0].mxu0
  %v343 = vadd.f32 0.0, %v342
  %v344 = vpop.f32.mrb[0].mxu0
  %345 = vmatprep.mubr.bf16.mxu0 0
  %346 = vmatmul.mubr.bf16.gmra.mrb[0].mxu0 %v190
  %v347 = vpop.f32.mrb[0].mxu0
  %v348 = vadd.f32 0.0, %v347
  %v349 = vpop.f32.mrb[0].mxu0
  %v350 = vpop.f32.mrb[0].mxu0
  %v351 = vadd.f32 0.0, %v350
  %v352 = vpop.f32.mrb[0].mxu0
  %353 = vmatprep.mubr.bf16.mxu0 0
  %354 = vmatmul.mubr.bf16.gmra.mrb[0].mxu0 %v191
  %v355 = vpop.f32.mrb[0].mxu0
  %v356 = vadd.f32 0.0, %v355
  %v357 = vpop.f32.mrb[0].mxu0
  %v358 = vpop.f32.mrb[0].mxu0
  %v359 = vadd.f32 0.0, %v358
  %v360 = vpop.f32.mrb[0].mxu0
  %361 = vmatprep.mubr.bf16.mxu0 0
  %362 = vmatmul.mubr.bf16.gmra.mrb[0].mxu0 %v192
  %v363 = vpop.f32.mrb[0].mxu0
  %v364 = vadd.f32 0.0, %v363
  %v365 = vpop.f32.mrb[0].mxu0
  %v366 = vpop.f32.mrb[0].mxu0
  %v367 = vadd.f32 0.0, %v366
  %v368 = vpop.f32.mrb[0].mxu0
  %369 = vdwg.mxu0
  %v370 = vmax.f32 %v244, 0.0
  %v371 = vmax.f32 %v247, 0.0
  %v372 = vmax.f32 %v252, 0.0
  %v373 = vmax.f32 %v255, 0.0
  %v374 = vmax.f32 %v260, 0.0
  %v375 = vmax.f32 %v263, 0.0
  %v376 = vmax.f32 %v268, 0.0
  %v377 = vmax.f32 %v271, 0.0
  %v378 = vmax.f32 %v276, 0.0
  %v379 = vmax.f32 %v279, 0.0
  %v380 = vmax.f32 %v284, 0.0
  %v381 = vmax.f32 %v287, 0.0
  %v382 = vmax.f32 %v292, 0.0
  %v383 = vmax.f32 %v295, 0.0
  %v384 = vmax.f32 %v300, 0.0
  %v385 = vmax.f32 %v303, 0.0
  %v386 = vmax.f32 %v308, 0.0
  %v387 = vmax.f32 %v311, 0.0
  %v388 = vmax.f32 %v316, 0.0
  %v389 = vmax.f32 %v319, 0.0
  %v390 = vmax.f32 %v324, 0.0
  %v391 = vmax.f32 %v327, 0.0
  %v392 = vmax.f32 %v332, 0.0
  %v393 = vmax.f32 %v335, 0.0
  %v394 = vmax.f32 %v340, 0.0
  %v395 = vmax.f32 %v343, 0.0
  %v396 = vmax.f32 %v348, 0.0
  %v397 = vmax.f32 %v351, 0.0
  %v398 = vmax.f32 %v356, 0.0
  %v399 = vmax.f32 %v359, 0.0
  %v400 = vmax.f32 %v364, 0.0
  %v401 = vmax.f32 %v367, 0.0
  %v402 = vpack.c.bf16 %v371, %v370
  %v403 = vpack.c.bf16 %v373, %v372
  %v404 = vpack.c.bf16 %v375, %v374
  %v405 = vpack.c.bf16 %v377, %v376
  %v406 = vpack.c.bf16 %v379, %v378
  %v407 = vpack.c.bf16 %v381, %v380
  %v408 = vpack.c.bf16 %v383, %v382
  %v409 = vpack.c.bf16 %v385, %v384
  %v410 = vpack.c.bf16 %v387, %v386
  %v411 = vpack.c.bf16 %v389, %v388
  %v412 = vpack.c.bf16 %v391, %v390
  %v413 = vpack.c.bf16 %v393, %v392
  %v414 = vpack.c.bf16 %v395, %v394
  %v415 = vpack.c.bf16 %v397, %v396
  %v416 = vpack.c.bf16 %v399, %v398
  %v417 = vpack.c.bf16 %v401, %v400
  %v418 = vld [vmem:[%s2] sm:$0xff]
  %v419 = vld [vmem:[%s2 + $0x8] sm:$0xff]
  %v420 = vld [vmem:[%s2 + $0x10] sm:$0xff]
  %v421 = vld [vmem:[%s2 + $0x18] sm:$0xff]
  %v422 = vld [vmem:[%s2 + $0x20] sm:$0xff]
  %v423 = vld [vmem:[%s2 + $0x28] sm:$0xff]
  %v424 = vld [vmem:[%s2 + $0x30] sm:$0xff]
  %v425 = vld [vmem:[%s2 + $0x38] sm:$0xff]
  %v426 = vld [vmem:[%s2 + $0x40] sm:$0xff]
  %v427 = vld [vmem:[%s2 + $0x48] sm:$0xff]
  %v428 = vld [vmem:[%s2 + $0x50] sm:$0xff]
  %v429 = vld [vmem:[%s2 + $0x58] sm:$0xff]
  %v430 = vld [vmem:[%s2 + $0x60] sm:$0xff]
  %v431 = vld [vmem:[%s2 + $0x68] sm:$0xff]
  %v432 = vld [vmem:[%s2 + $0x70] sm:$0xff]
  %v433 = vld [vmem:[%s2 + $0x78] sm:$0xff]
  %v434 = vld [vmem:[%s2 + $0x80] sm:$0xff]
  %v435 = vld [vmem:[%s2 + $0x88] sm:$0xff]
  %v436 = vld [vmem:[%s2 + $0x90] sm:$0xff]
  %v437 = vld [vmem:[%s2 + $0x98] sm:$0xff]
  %v438 = vld [vmem:[%s2 + $0xa0] sm:$0xff]
  %v439 = vld [vmem:[%s2 + $0xa8] sm:$0xff]
  %v440 = vld [vmem:[%s2 + $0xb0] sm:$0xff]
  %v441 = vld [vmem:[%s2 + $0xb8] sm:$0xff]
  %v442 = vld [vmem:[%s2 + $0xc0] sm:$0xff]
  %v443 = vld [vmem:[%s2 + $0xc8] sm:$0xff]
  %v444 = vld [vmem:[%s2 + $0xd0] sm:$0xff]
  %v445 = vld [vmem:[%s2 + $0xd8] sm:$0xff]
  %v446 = vld [vmem:[%s2 + $0xe0] sm:$0xff]
  %v447 = vld [vmem:[%s2 + $0xe8] sm:$0xff]
  %v448 = vld [vmem:[%s2 + $0xf0] sm:$0xff]
  %v449 = vld [vmem:[%s2 + $0xf8] sm:$0xff]
  %v450 = vld [vmem:[%s3] sm:$0xff]
  %v451 = vld [vmem:[%s3 + $0x8] sm:$0xff]
  %v452 = vld [vmem:[%s3 + $0x10] sm:$0xff]
  %v453 = vld [vmem:[%s3 + $0x18] sm:$0xff]
  %v454 = vld [vmem:[%s3 + $0x20] sm:$0xff]
  %v455 = vld [vmem:[%s3 + $0x28] sm:$0xff]
  %v456 = vld [vmem:[%s3 + $0x30] sm:$0xff]
  %v457 = vld [vmem:[%s3 + $0x38] sm:$0xff]
  %v458 = vld [vmem:[%s3 + $0x40] sm:$0xff]
  %v459 = vld [vmem:[%s3 + $0x48] sm:$0xff]
  %v460 = vld [vmem:[%s3 + $0x50] sm:$0xff]
  %v461 = vld [vmem:[%s3 + $0x58] sm:$0xff]
  %v462 = vld [vmem:[%s3 + $0x60] sm:$0xff]
  %v463 = vld [vmem:[%s3 + $0x68] sm:$0xff]
  %v464 = vld [vmem:[%s3 + $0x70] sm:$0xff]
  %v465 = vld [vmem:[%s3 + $0x78] sm:$0xff]
  %v466 = vld [vmem:[%s3 + $0x80] sm:$0xff]
  %v467 = vld [vmem:[%s3 + $0x88] sm:$0xff]
  %v468 = vld [vmem:[%s3 + $0x90] sm:$0xff]
  %v469 = vld [vmem:[%s3 + $0x98] sm:$0xff]
  %v470 = vld [vmem:[%s3 + $0xa0] sm:$0xff]
  %v471 = vld [vmem:[%s3 + $0xa8] sm:$0xff]
  %v472 = vld [vmem:[%s3 + $0xb0] sm:$0xff]
  %v473 = vld [vmem:[%s3 + $0xb8] sm:$0xff]
  %v474 = vld [vmem:[%s3 + $0xc0] sm:$0xff]
  %v475 = vld [vmem:[%s3 + $0xc8] sm:$0xff]
  %v476 = vld [vmem:[%s3 + $0xd0] sm:$0xff]
  %v477 = vld [vmem:[%s3 + $0xd8] sm:$0xff]
  %v478 = vld [vmem:[%s3 + $0xe0] sm:$0xff]
  %v479 = vld [vmem:[%s3 + $0xe8] sm:$0xff]
  %v480 = vld [vmem:[%s3 + $0xf0] sm:$0xff]
  %v481 = vld [vmem:[%s3 + $0xf8] sm:$0xff]
  %483 = vset.pattern.permute.xlu0 0
  %484 = vperm.xlu0 %483, %v450
  %v485 = vpop.permute.xlu0 %484
  %488 = vset.pattern.permute.xlu0 0
  %489 = vperm.xlu0 %488, %v451
  %v490 = vpop.permute.xlu0 %489
  %493 = vset.pattern.permute.xlu0 0
  %494 = vperm.xlu0 %493, %v452
  %v495 = vpop.permute.xlu0 %494
  %498 = vset.pattern.permute.xlu0 0
  %499 = vperm.xlu0 %498, %v453
  %v500 = vpop.permute.xlu0 %499
  %503 = vset.pattern.permute.xlu0 0
  %504 = vperm.xlu0 %503, %v454
  %v505 = vpop.permute.xlu0 %504
  %508 = vset.pattern.permute.xlu0 0
  %509 = vperm.xlu0 %508, %v455
  %v510 = vpop.permute.xlu0 %509
  %513 = vset.pattern.permute.xlu0 0
  %514 = vperm.xlu0 %513, %v456
  %v515 = vpop.permute.xlu0 %514
  %518 = vset.pattern.permute.xlu0 0
  %519 = vperm.xlu0 %518, %v457
  %v520 = vpop.permute.xlu0 %519
  %523 = vset.pattern.permute.xlu0 0
  %524 = vperm.xlu0 %523, %v458
  %v525 = vpop.permute.xlu0 %524
  %528 = vset.pattern.permute.xlu0 0
  %529 = vperm.xlu0 %528, %v459
  %v530 = vpop.permute.xlu0 %529
  %533 = vset.pattern.permute.xlu0 0
  %534 = vperm.xlu0 %533, %v460
  %v535 = vpop.permute.xlu0 %534
  %538 = vset.pattern.permute.xlu0 0
  %539 = vperm.xlu0 %538, %v461
  %v540 = vpop.permute.xlu0 %539
  %543 = vset.pattern.permute.xlu0 0
  %544 = vperm.xlu0 %543, %v462
  %v545 = vpop.permute.xlu0 %544
  %548 = vset.pattern.permute.xlu0 0
  %549 = vperm.xlu0 %548, %v463
  %v550 = vpop.permute.xlu0 %549
  %553 = vset.pattern.permute.xlu0 0
  %554 = vperm.xlu0 %553, %v464
  %v555 = vpop.permute.xlu0 %554
  %558 = vset.pattern.permute.xlu0 0
  %559 = vperm.xlu0 %558, %v465
  %v560 = vpop.permute.xlu0 %559
  %563 = vset.pattern.permute.xlu0 0
  %564 = vperm.xlu0 %563, %v466
  %v565 = vpop.permute.xlu0 %564
  %568 = vset.pattern.permute.xlu0 0
  %569 = vperm.xlu0 %568, %v467
  %v570 = vpop.permute.xlu0 %569
  %573 = vset.pattern.permute.xlu0 0
  %574 = vperm.xlu0 %573, %v468
  %v575 = vpop.permute.xlu0 %574
  %578 = vset.pattern.permute.xlu0 0
  %579 = vperm.xlu0 %578, %v469
  %v580 = vpop.permute.xlu0 %579
  %583 = vset.pattern.permute.xlu0 0
  %584 = vperm.xlu0 %583, %v470
  %v585 = vpop.permute.xlu0 %584
  %588 = vset.pattern.permute.xlu0 0
  %589 = vperm.xlu0 %588, %v471
  %v590 = vpop.permute.xlu0 %589
  %593 = vset.pattern.permute.xlu0 0
  %594 = vperm.xlu0 %593, %v472
  %v595 = vpop.permute.xlu0 %594
  %598 = vset.pattern.permute.xlu0 0
  %599 = vperm.xlu0 %598, %v473
  %v600 = vpop.permute.xlu0 %599
  %603 = vset.pattern.permute.xlu0 0
  %604 = vperm.xlu0 %603, %v474
  %v605 = vpop.permute.xlu0 %604
  %608 = vset.pattern.permute.xlu0 0
  %609 = vperm.xlu0 %608, %v475
  %v610 = vpop.permute.xlu0 %609
  %613 = vset.pattern.permute.xlu0 0
  %614 = vperm.xlu0 %613, %v476
  %v615 = vpop.permute.xlu0 %614
  %618 = vset.pattern.permute.xlu0 0
  %619 = vperm.xlu0 %618, %v477
  %v620 = vpop.permute.xlu0 %619
  %623 = vset.pattern.permute.xlu0 0
  %624 = vperm.xlu0 %623, %v478
  %v625 = vpop.permute.xlu0 %624
  %628 = vset.pattern.permute.xlu0 0
  %629 = vperm.xlu0 %628, %v479
  %v630 = vpop.permute.xlu0 %629
  %633 = vset.pattern.permute.xlu0 0
  %634 = vperm.xlu0 %633, %v480
  %v635 = vpop.permute.xlu0 %634
  %638 = vset.pattern.permute.xlu0 0
  %639 = vperm.xlu0 %638, %v481
  %v640 = vpop.permute.xlu0 %639
  %v674 = vunpack.c.l.b16 %v418
  %v675 = vunpack.c.h.b16 %v418
  %v676 = vunpack.c.l.b16 %v419
  %v677 = vunpack.c.h.b16 %v419
  %v678 = vunpack.c.l.b16 %v420
  %v679 = vunpack.c.h.b16 %v420
  %v680 = vunpack.c.l.b16 %v421
  %v681 = vunpack.c.h.b16 %v421
  %v682 = vunpack.c.l.b16 %v422
  %v683 = vunpack.c.h.b16 %v422
  %v684 = vunpack.c.l.b16 %v423
  %v685 = vunpack.c.h.b16 %v423
  %v686 = vunpack.c.l.b16 %v424
  %v687 = vunpack.c.h.b16 %v424
  %v688 = vunpack.c.l.b16 %v425
  %v689 = vunpack.c.h.b16 %v425
  %v690 = vunpack.c.l.b16 %v426
  %v691 = vunpack.c.h.b16 %v426
  %v692 = vunpack.c.l.b16 %v427
  %v693 = vunpack.c.h.b16 %v427
  %v694 = vunpack.c.l.b16 %v428
  %v695 = vunpack.c.h.b16 %v428
  %v696 = vunpack.c.l.b16 %v429
  %v697 = vunpack.c.h.b16 %v429
  %v698 = vunpack.c.l.b16 %v430
  %v699 = vunpack.c.h.b16 %v430
  %v700 = vunpack.c.l.b16 %v431
  %v701 = vunpack.c.h.b16 %v431
  %v702 = vunpack.c.l.b16 %v432
  %v703 = vunpack.c.h.b16 %v432
  %v704 = vunpack.c.l.b16 %v433
  %v705 = vunpack.c.h.b16 %v433
  %v706 = vunpack.c.l.b16 %v434
  %v707 = vunpack.c.h.b16 %v434
  %v708 = vunpack.c.l.b16 %v435
  %v709 = vunpack.c.h.b16 %v435
  %v710 = vunpack.c.l.b16 %v436
  %v711 = vunpack.c.h.b16 %v436
  %v712 = vunpack.c.l.b16 %v437
  %v713 = vunpack.c.h.b16 %v437
  %v714 = vunpack.c.l.b16 %v438
  %v715 = vunpack.c.h.b16 %v438
  %v716 = vunpack.c.l.b16 %v439
  %v717 = vunpack.c.h.b16 %v439
  %v718 = vunpack.c.l.b16 %v440
  %v719 = vunpack.c.h.b16 %v440
  %v720 = vunpack.c.l.b16 %v441
  %v721 = vunpack.c.h.b16 %v441
  %v722 = vunpack.c.l.b16 %v442
  %v723 = vunpack.c.h.b16 %v442
  %v724 = vunpack.c.l.b16 %v443
  %v725 = vunpack.c.h.b16 %v443
  %v726 = vunpack.c.l.b16 %v444
  %v727 = vunpack.c.h.b16 %v444
  %v728 = vunpack.c.l.b16 %v445
  %v729 = vunpack.c.h.b16 %v445
  %v730 = vunpack.c.l.b16 %v446
  %v731 = vunpack.c.h.b16 %v446
  %v732 = vunpack.c.l.b16 %v447
  %v733 = vunpack.c.h.b16 %v447
  %v734 = vunpack.c.l.b16 %v448
  %v735 = vunpack.c.h.b16 %v448
  %v736 = vunpack.c.l.b16 %v449
  %v737 = vunpack.c.h.b16 %v449
  %v738 = vpack.c.b16 %v676, %v674
  %v739 = vpack.c.b16 %v677, %v675
  %v740 = vpack.c.b16 %v680, %v678
  %v741 = vpack.c.b16 %v681, %v679
  %v742 = vpack.c.b16 %v684, %v682
  %v743 = vpack.c.b16 %v685, %v683
  %v744 = vpack.c.b16 %v688, %v686
  %v745 = vpack.c.b16 %v689, %v687
  %v746 = vpack.c.b16 %v692, %v690
  %v747 = vpack.c.b16 %v693, %v691
  %v748 = vpack.c.b16 %v696, %v694
  %v749 = vpack.c.b16 %v697, %v695
  %v750 = vpack.c.b16 %v700, %v698
  %v751 = vpack.c.b16 %v701, %v699
  %v752 = vpack.c.b16 %v704, %v702
  %v753 = vpack.c.b16 %v705, %v703
  %v754 = vpack.c.b16 %v708, %v706
  %v755 = vpack.c.b16 %v709, %v707
  %v756 = vpack.c.b16 %v712, %v710
  %v757 = vpack.c.b16 %v713, %v711
  %v758 = vpack.c.b16 %v716, %v714
  %v759 = vpack.c.b16 %v717, %v715
  %v760 = vpack.c.b16 %v720, %v718
  %v761 = vpack.c.b16 %v721, %v719
  %v762 = vpack.c.b16 %v724, %v722
  %v763 = vpack.c.b16 %v725, %v723
  %v764 = vpack.c.b16 %v728, %v726
  %v765 = vpack.c.b16 %v729, %v727
  %v766 = vpack.c.b16 %v732, %v730
  %v767 = vpack.c.b16 %v733, %v731
  %v768 = vpack.c.b16 %v736, %v734
  %v769 = vpack.c.b16 %v737, %v735
  %802 = vmatprep.subr.bf16.mxu0 0
  %803 = vmatpush1.bf16.msra.mxu0 %v402
  %804 = vmatprep.subr.bf16.mxu0 0
  %805 = vmatpush1.bf16.msra.mxu0 %v403
  %806 = vmatprep.subr.bf16.mxu0 0
  %807 = vmatpush1.bf16.msra.mxu0 %v404
  %808 = vmatprep.subr.bf16.mxu0 0
  %809 = vmatpush1.bf16.msra.mxu0 %v405
  %810 = vmatprep.subr.bf16.mxu0 0
  %811 = vmatpush1.bf16.msra.mxu0 %v406
  %812 = vmatprep.subr.bf16.mxu0 0
  %813 = vmatpush1.bf16.msra.mxu0 %v407
  %814 = vmatprep.subr.bf16.mxu0 0
  %815 = vmatpush1.bf16.msra.mxu0 %v408
  %816 = vmatprep.subr.bf16.mxu0 0
  %817 = vmatpush1.bf16.msra.mxu0 %v409
  %818 = vmatprep.subr.bf16.mxu0 0
  %819 = vmatpush1.bf16.msra.mxu0 %v410
  %820 = vmatprep.subr.bf16.mxu0 0
  %821 = vmatpush1.bf16.msra.mxu0 %v411
  %822 = vmatprep.subr.bf16.mxu0 0
  %823 = vmatpush1.bf16.msra.mxu0 %v412
  %824 = vmatprep.subr.bf16.mxu0 0
  %825 = vmatpush1.bf16.msra.mxu0 %v413
  %826 = vmatprep.subr.bf16.mxu0 0
  %827 = vmatpush1.bf16.msra.mxu0 %v414
  %828 = vmatprep.subr.bf16.mxu0 0
  %829 = vmatpush1.bf16.msra.mxu0 %v415
  %830 = vmatprep.subr.bf16.mxu0 0
  %831 = vmatpush1.bf16.msra.mxu0 %v416
  %832 = vmatprep.subr.bf16.mxu0 0
  %833 = vmatpush1.bf16.msra.mxu0 %v417
  %834 = vmatprep.mubr.bf16.mxu0 %v739
  %835 = vmatmul.mubr.bf16.gmra.mrb[0].mxu0 %v738
  %v836 = vpop.f32.mrb[0].mxu0
  %v837 = vadd.f32 %v485, %v836
  %v838 = vpop.f32.mrb[0].mxu0
  %v839 = vpop.f32.mrb[0].mxu0
  %v840 = vadd.f32 %v490, %v839
  %v841 = vpop.f32.mrb[0].mxu0
  %842 = vmatprep.mubr.bf16.mxu0 %v741
  %843 = vmatmul.mubr.bf16.gmra.mrb[0].mxu0 %v740
  %v844 = vpop.f32.mrb[0].mxu0
  %v845 = vadd.f32 %v495, %v844
  %v846 = vpop.f32.mrb[0].mxu0
  %v847 = vpop.f32.mrb[0].mxu0
  %v848 = vadd.f32 %v500, %v847
  %v849 = vpop.f32.mrb[0].mxu0
  %850 = vmatprep.mubr.bf16.mxu0 %v743
  %851 = vmatmul.mubr.bf16.gmra.mrb[0].mxu0 %v742
  %v852 = vpop.f32.mrb[0].mxu0
  %v853 = vadd.f32 %v505, %v852
  %v854 = vpop.f32.mrb[0].mxu0
  %v855 = vpop.f32.mrb[0].mxu0
  %v856 = vadd.f32 %v510, %v855
  %v857 = vpop.f32.mrb[0].mxu0
  %858 = vmatprep.mubr.bf16.mxu0 %v745
  %859 = vmatmul.mubr.bf16.gmra.mrb[0].mxu0 %v744
  %v860 = vpop.f32.mrb[0].mxu0
  %v861 = vadd.f32 %v515, %v860
  %v862 = vpop.f32.mrb[0].mxu0
  %v863 = vpop.f32.mrb[0].mxu0
  %v864 = vadd.f32 %v520, %v863
  %v865 = vpop.f32.mrb[0].mxu0
  %866 = vmatprep.mubr.bf16.mxu0 %v747
  %867 = vmatmul.mubr.bf16.gmra.mrb[0].mxu0 %v746
  %v868 = vpop.f32.mrb[0].mxu0
  %v869 = vadd.f32 %v525, %v868
  %v870 = vpop.f32.mrb[0].mxu0
  %v871 = vpop.f32.mrb[0].mxu0
  %v872 = vadd.f32 %v530, %v871
  %v873 = vpop.f32.mrb[0].mxu0
  %874 = vmatprep.mubr.bf16.mxu0 %v749
  %875 = vmatmul.mubr.bf16.gmra.mrb[0].mxu0 %v748
  %v876 = vpop.f32.mrb[0].mxu0
  %v877 = vadd.f32 %v535, %v876
  %v878 = vpop.f32.mrb[0].mxu0
  %v879 = vpop.f32.mrb[0].mxu0
  %v880 = vadd.f32 %v540, %v879
  %v881 = vpop.f32.mrb[0].mxu0
  %882 = vmatprep.mubr.bf16.mxu0 %v751
  %883 = vmatmul.mubr.bf16.gmra.mrb[0].mxu0 %v750
  %v884 = vpop.f32.mrb[0].mxu0
  %v885 = vadd.f32 %v545, %v884
  %v886 = vpop.f32.mrb[0].mxu0
  %v887 = vpop.f32.mrb[0].mxu0
  %v888 = vadd.f32 %v550, %v887
  %v889 = vpop.f32.mrb[0].mxu0
  %890 = vmatprep.mubr.bf16.mxu0 %v753
  %891 = vmatmul.mubr.bf16.gmra.mrb[0].mxu0 %v752
  %v892 = vpop.f32.mrb[0].mxu0
  %v893 = vadd.f32 %v555, %v892
  %v894 = vpop.f32.mrb[0].mxu0
  %v895 = vpop.f32.mrb[0].mxu0
  %v896 = vadd.f32 %v560, %v895
  %v897 = vpop.f32.mrb[0].mxu0
  %898 = vmatprep.mubr.bf16.mxu0 %v755
  %899 = vmatmul.mubr.bf16.gmra.mrb[0].mxu0 %v754
  %v900 = vpop.f32.mrb[0].mxu0
  %v901 = vadd.f32 %v565, %v900
  %v902 = vpop.f32.mrb[0].mxu0
  %v903 = vpop.f32.mrb[0].mxu0
  %v904 = vadd.f32 %v570, %v903
  %v905 = vpop.f32.mrb[0].mxu0
  %906 = vmatprep.mubr.bf16.mxu0 %v757
  %907 = vmatmul.mubr.bf16.gmra.mrb[0].mxu0 %v756
  %v908 = vpop.f32.mrb[0].mxu0
  %v909 = vadd.f32 %v575, %v908
  %v910 = vpop.f32.mrb[0].mxu0
  %v911 = vpop.f32.mrb[0].mxu0
  %v912 = vadd.f32 %v580, %v911
  %v913 = vpop.f32.mrb[0].mxu0
  %914 = vmatprep.mubr.bf16.mxu0 %v759
  %915 = vmatmul.mubr.bf16.gmra.mrb[0].mxu0 %v758
  %v916 = vpop.f32.mrb[0].mxu0
  %v917 = vadd.f32 %v585, %v916
  %v918 = vpop.f32.mrb[0].mxu0
  %v919 = vpop.f32.mrb[0].mxu0
  %v920 = vadd.f32 %v590, %v919
  %v921 = vpop.f32.mrb[0].mxu0
  %922 = vmatprep.mubr.bf16.mxu0 %v761
  %923 = vmatmul.mubr.bf16.gmra.mrb[0].mxu0 %v760
  %v924 = vpop.f32.mrb[0].mxu0
  %v925 = vadd.f32 %v595, %v924
  %v926 = vpop.f32.mrb[0].mxu0
  %v927 = vpop.f32.mrb[0].mxu0
  %v928 = vadd.f32 %v600, %v927
  %v929 = vpop.f32.mrb[0].mxu0
  %930 = vmatprep.mubr.bf16.mxu0 %v763
  %931 = vmatmul.mubr.bf16.gmra.mrb[0].mxu0 %v762
  %v932 = vpop.f32.mrb[0].mxu0
  %v933 = vadd.f32 %v605, %v932
  %v934 = vpop.f32.mrb[0].mxu0
  %v935 = vpop.f32.mrb[0].mxu0
  %v936 = vadd.f32 %v610, %v935
  %v937 = vpop.f32.mrb[0].mxu0
  %938 = vmatprep.mubr.bf16.mxu0 %v765
  %939 = vmatmul.mubr.bf16.gmra.mrb[0].mxu0 %v764
  %v940 = vpop.f32.mrb[0].mxu0
  %v941 = vadd.f32 %v615, %v940
  %v942 = vpop.f32.mrb[0].mxu0
  %v943 = vpop.f32.mrb[0].mxu0
  %v944 = vadd.f32 %v620, %v943
  %v945 = vpop.f32.mrb[0].mxu0
  %946 = vmatprep.mubr.bf16.mxu0 %v767
  %947 = vmatmul.mubr.bf16.gmra.mrb[0].mxu0 %v766
  %v948 = vpop.f32.mrb[0].mxu0
  %v949 = vadd.f32 %v625, %v948
  %v950 = vpop.f32.mrb[0].mxu0
  %v951 = vpop.f32.mrb[0].mxu0
  %v952 = vadd.f32 %v630, %v951
  %v953 = vpop.f32.mrb[0].mxu0
  %954 = vmatprep.mubr.bf16.mxu0 %v769
  %955 = vmatmul.mubr.bf16.gmra.mrb[0].mxu0 %v768
  %v956 = vpop.f32.mrb[0].mxu0
  %v957 = vadd.f32 %v635, %v956
  %v958 = vpop.f32.mrb[0].mxu0
  %v959 = vpop.f32.mrb[0].mxu0
  %v960 = vadd.f32 %v640, %v959
  %v961 = vpop.f32.mrb[0].mxu0
  %962 = vdwg.mxu0
  %v963 = vmax.f32 %v837, 0.0
  %v964 = vmax.f32 %v840, 0.0
  %v965 = vmax.f32 %v845, 0.0
  %v966 = vmax.f32 %v848, 0.0
  %v967 = vmax.f32 %v853, 0.0
  %v968 = vmax.f32 %v856, 0.0
  %v969 = vmax.f32 %v861, 0.0
  %v970 = vmax.f32 %v864, 0.0
  %v971 = vmax.f32 %v869, 0.0
  %v972 = vmax.f32 %v872, 0.0
  %v973 = vmax.f32 %v877, 0.0
  %v974 = vmax.f32 %v880, 0.0
  %v975 = vmax.f32 %v885, 0.0
  %v976 = vmax.f32 %v888, 0.0
  %v977 = vmax.f32 %v893, 0.0
  %v978 = vmax.f32 %v896, 0.0
  %v979 = vmax.f32 %v901, 0.0
  %v980 = vmax.f32 %v904, 0.0
  %v981 = vmax.f32 %v909, 0.0
  %v982 = vmax.f32 %v912, 0.0
  %v983 = vmax.f32 %v917, 0.0
  %v984 = vmax.f32 %v920, 0.0
  %v985 = vmax.f32 %v925, 0.0
  %v986 = vmax.f32 %v928, 0.0
  %v987 = vmax.f32 %v933, 0.0
  %v988 = vmax.f32 %v936, 0.0
  %v989 = vmax.f32 %v941, 0.0
  %v990 = vmax.f32 %v944, 0.0
  %v991 = vmax.f32 %v949, 0.0
  %v992 = vmax.f32 %v952, 0.0
  %v993 = vmax.f32 %v957, 0.0
  %v994 = vmax.f32 %v960, 0.0
  %v995 = vld [vmem:[%s4] sm:$0xff]
  %v996 = vld [vmem:[%s4 + $0x8] sm:$0xff]
  %v997 = vld [vmem:[%s4 + $0x10] sm:$0xff]
  %v998 = vld [vmem:[%s4 + $0x18] sm:$0xff]
  %v999 = vld [vmem:[%s4 + $0x20] sm:$0xff]
  %v1000 = vld [vmem:[%s4 + $0x28] sm:$0xff]
  %v1001 = vld [vmem:[%s4 + $0x30] sm:$0xff]
  %v1002 = vld [vmem:[%s4 + $0x38] sm:$0xff]
  %v1003 = vld [vmem:[%s4 + $0x40] sm:$0xff]
  %v1004 = vld [vmem:[%s4 + $0x48] sm:$0xff]
  %v1005 = vld [vmem:[%s4 + $0x50] sm:$0xff]
  %v1006 = vld [vmem:[%s4 + $0x58] sm:$0xff]
  %v1007 = vld [vmem:[%s4 + $0x60] sm:$0xff]
  %v1008 = vld [vmem:[%s4 + $0x68] sm:$0xff]
  %v1009 = vld [vmem:[%s4 + $0x70] sm:$0xff]
  %v1010 = vld [vmem:[%s4 + $0x78] sm:$0xff]
  %v1011 = vld [vmem:[%s4 + $0x80] sm:$0xff]
  %v1012 = vld [vmem:[%s4 + $0x88] sm:$0xff]
  %v1013 = vld [vmem:[%s4 + $0x90] sm:$0xff]
  %v1014 = vld [vmem:[%s4 + $0x98] sm:$0xff]
  %v1015 = vld [vmem:[%s4 + $0xa0] sm:$0xff]
  %v1016 = vld [vmem:[%s4 + $0xa8] sm:$0xff]
  %v1017 = vld [vmem:[%s4 + $0xb0] sm:$0xff]
  %v1018 = vld [vmem:[%s4 + $0xb8] sm:$0xff]
  %v1019 = vld [vmem:[%s4 + $0xc0] sm:$0xff]
  %v1020 = vld [vmem:[%s4 + $0xc8] sm:$0xff]
  %v1021 = vld [vmem:[%s4 + $0xd0] sm:$0xff]
  %v1022 = vld [vmem:[%s4 + $0xd8] sm:$0xff]
  %v1023 = vld [vmem:[%s4 + $0xe0] sm:$0xff]
  %v1024 = vld [vmem:[%s4 + $0xe8] sm:$0xff]
  %v1025 = vld [vmem:[%s4 + $0xf0] sm:$0xff]
  %v1026 = vld [vmem:[%s4 + $0xf8] sm:$0xff]
  %1028 = vset.pattern.permute.xlu0 0
  %1029 = vperm.xlu0 %1028, %v995
  %v1030 = vpop.permute.xlu0 %1029
  %1033 = vset.pattern.permute.xlu0 0
  %1034 = vperm.xlu0 %1033, %v996
  %v1035 = vpop.permute.xlu0 %1034
  %1038 = vset.pattern.permute.xlu0 0
  %1039 = vperm.xlu0 %1038, %v997
  %v1040 = vpop.permute.xlu0 %1039
  %1043 = vset.pattern.permute.xlu0 0
  %1044 = vperm.xlu0 %1043, %v998
  %v1045 = vpop.permute.xlu0 %1044
  %1048 = vset.pattern.permute.xlu0 0
  %1049 = vperm.xlu0 %1048, %v999
  %v1050 = vpop.permute.xlu0 %1049
  %1053 = vset.pattern.permute.xlu0 0
  %1054 = vperm.xlu0 %1053, %v1000
  %v1055 = vpop.permute.xlu0 %1054
  %1058 = vset.pattern.permute.xlu0 0
  %1059 = vperm.xlu0 %1058, %v1001
  %v1060 = vpop.permute.xlu0 %1059
  %1063 = vset.pattern.permute.xlu0 0
  %1064 = vperm.xlu0 %1063, %v1002
  %v1065 = vpop.permute.xlu0 %1064
  %1068 = vset.pattern.permute.xlu0 0
  %1069 = vperm.xlu0 %1068, %v1003
  %v1070 = vpop.permute.xlu0 %1069
  %1073 = vset.pattern.permute.xlu0 0
  %1074 = vperm.xlu0 %1073, %v1004
  %v1075 = vpop.permute.xlu0 %1074
  %1078 = vset.pattern.permute.xlu0 0
  %1079 = vperm.xlu0 %1078, %v1005
  %v1080 = vpop.permute.xlu0 %1079
  %1083 = vset.pattern.permute.xlu0 0
  %1084 = vperm.xlu0 %1083, %v1006
  %v1085 = vpop.permute.xlu0 %1084
  %1088 = vset.pattern.permute.xlu0 0
  %1089 = vperm.xlu0 %1088, %v1007
  %v1090 = vpop.permute.xlu0 %1089
  %1093 = vset.pattern.permute.xlu0 0
  %1094 = vperm.xlu0 %1093, %v1008
  %v1095 = vpop.permute.xlu0 %1094
  %1098 = vset.pattern.permute.xlu0 0
  %1099 = vperm.xlu0 %1098, %v1009
  %v1100 = vpop.permute.xlu0 %1099
  %1103 = vset.pattern.permute.xlu0 0
  %1104 = vperm.xlu0 %1103, %v1010
  %v1105 = vpop.permute.xlu0 %1104
  %1108 = vset.pattern.permute.xlu0 0
  %1109 = vperm.xlu0 %1108, %v1011
  %v1110 = vpop.permute.xlu0 %1109
  %1113 = vset.pattern.permute.xlu0 0
  %1114 = vperm.xlu0 %1113, %v1012
  %v1115 = vpop.permute.xlu0 %1114
  %1118 = vset.pattern.permute.xlu0 0
  %1119 = vperm.xlu0 %1118, %v1013
  %v1120 = vpop.permute.xlu0 %1119
  %1123 = vset.pattern.permute.xlu0 0
  %1124 = vperm.xlu0 %1123, %v1014
  %v1125 = vpop.permute.xlu0 %1124
  %1128 = vset.pattern.permute.xlu0 0
  %1129 = vperm.xlu0 %1128, %v1015
  %v1130 = vpop.permute.xlu0 %1129
  %1133 = vset.pattern.permute.xlu0 0
  %1134 = vperm.xlu0 %1133, %v1016
  %v1135 = vpop.permute.xlu0 %1134
  %1138 = vset.pattern.permute.xlu0 0
  %1139 = vperm.xlu0 %1138, %v1017
  %v1140 = vpop.permute.xlu0 %1139
  %1143 = vset.pattern.permute.xlu0 0
  %1144 = vperm.xlu0 %1143, %v1018
  %v1145 = vpop.permute.xlu0 %1144
  %1148 = vset.pattern.permute.xlu0 0
  %1149 = vperm.xlu0 %1148, %v1019
  %v1150 = vpop.permute.xlu0 %1149
  %1153 = vset.pattern.permute.xlu0 0
  %1154 = vperm.xlu0 %1153, %v1020
  %v1155 = vpop.permute.xlu0 %1154
  %1158 = vset.pattern.permute.xlu0 0
  %1159 = vperm.xlu0 %1158, %v1021
  %v1160 = vpop.permute.xlu0 %1159
  %1163 = vset.pattern.permute.xlu0 0
  %1164 = vperm.xlu0 %1163, %v1022
  %v1165 = vpop.permute.xlu0 %1164
  %1168 = vset.pattern.permute.xlu0 0
  %1169 = vperm.xlu0 %1168, %v1023
  %v1170 = vpop.permute.xlu0 %1169
  %1173 = vset.pattern.permute.xlu0 0
  %1174 = vperm.xlu0 %1173, %v1024
  %v1175 = vpop.permute.xlu0 %1174
  %1178 = vset.pattern.permute.xlu0 0
  %1179 = vperm.xlu0 %1178, %v1025
  %v1180 = vpop.permute.xlu0 %1179
  %1183 = vset.pattern.permute.xlu0 0
  %1184 = vperm.xlu0 %1183, %v1026
  %v1185 = vpop.permute.xlu0 %1184
  %v1187 = vmul.f32 %v963, %v1030
  %v1188 = vmul.f32 %v964, %v1035
  %v1189 = vmul.f32 %v965, %v1040
  %v1190 = vmul.f32 %v966, %v1045
  %v1191 = vmul.f32 %v967, %v1050
  %v1192 = vmul.f32 %v968, %v1055
  %v1193 = vmul.f32 %v969, %v1060
  %v1194 = vmul.f32 %v970, %v1065
  %v1195 = vmul.f32 %v971, %v1070
  %v1196 = vmul.f32 %v972, %v1075
  %v1197 = vmul.f32 %v973, %v1080
  %v1198 = vmul.f32 %v974, %v1085
  %v1199 = vmul.f32 %v975, %v1090
  %v1200 = vmul.f32 %v976, %v1095
  %v1201 = vmul.f32 %v977, %v1100
  %v1202 = vmul.f32 %v978, %v1105
  %v1203 = vmul.f32 %v979, %v1110
  %v1204 = vmul.f32 %v980, %v1115
  %v1205 = vmul.f32 %v981, %v1120
  %v1206 = vmul.f32 %v982, %v1125
  %v1207 = vmul.f32 %v983, %v1130
  %v1208 = vmul.f32 %v984, %v1135
  %v1209 = vmul.f32 %v985, %v1140
  %v1210 = vmul.f32 %v986, %v1145
  %v1211 = vmul.f32 %v987, %v1150
  %v1212 = vmul.f32 %v988, %v1155
  %v1213 = vmul.f32 %v989, %v1160
  %v1214 = vmul.f32 %v990, %v1165
  %v1215 = vmul.f32 %v991, %v1170
  %v1216 = vmul.f32 %v992, %v1175
  %v1217 = vmul.f32 %v993, %v1180
  %v1218 = vmul.f32 %v994, %v1185
  %v1219 = vadd.f32 %v1187, %v1188
  %v1220 = vadd.f32 %v1219, %v1189
  %v1221 = vadd.f32 %v1220, %v1190
  %v1222 = vadd.f32 %v1221, %v1191
  %v1223 = vadd.f32 %v1222, %v1192
  %v1224 = vadd.f32 %v1223, %v1193
  %v1225 = vadd.f32 %v1224, %v1194
  %v1226 = vadd.f32 %v1225, %v1195
  %v1227 = vadd.f32 %v1226, %v1196
  %v1228 = vadd.f32 %v1227, %v1197
  %v1229 = vadd.f32 %v1228, %v1198
  %v1230 = vadd.f32 %v1229, %v1199
  %v1231 = vadd.f32 %v1230, %v1200
  %v1232 = vadd.f32 %v1231, %v1201
  %v1233 = vadd.f32 %v1232, %v1202
  %v1234 = vadd.f32 %v1233, %v1203
  %v1235 = vadd.f32 %v1234, %v1204
  %v1236 = vadd.f32 %v1235, %v1205
  %v1237 = vadd.f32 %v1236, %v1206
  %v1238 = vadd.f32 %v1237, %v1207
  %v1239 = vadd.f32 %v1238, %v1208
  %v1240 = vadd.f32 %v1239, %v1209
  %v1241 = vadd.f32 %v1240, %v1210
  %v1242 = vadd.f32 %v1241, %v1211
  %v1243 = vadd.f32 %v1242, %v1212
  %v1244 = vadd.f32 %v1243, %v1213
  %v1245 = vadd.f32 %v1244, %v1214
  %v1246 = vadd.f32 %v1245, %v1215
  %v1247 = vadd.f32 %v1246, %v1216
  %v1248 = vadd.f32 %v1247, %v1217
  %v1249 = vadd.f32 %v1248, %v1218
  %v1250 = vrot.slane %v1249, 4
  %v1251 = vadd.f32 %v1249, %v1250
  %v1252 = vrot.slane %v1251, 2
  %v1253 = vadd.f32 %v1251, %v1252
  %v1254 = vrot.slane %v1253, 1
  %v1255 = vadd.f32 %v1253, %v1254
  %s1256 = sld [smem:[#allocation2]]
  %v1257 = vstv %s1256
  %v1258 = vadd.f32 %v1255, %v1257
  %1259 = vst [vmem:[%s6] sm:$0x1] %v1258
  // Predicated region
  $region26: #{_critic_forward_impl.1} parent=0 // pred_check
    _
  $region27: #{_critic_forward_impl.1} parent=0 // pred_check_branch
    %1261 = sbr.rel (0) target = $region29
  $region28: #{_critic_forward_impl.1} parent=0 // pred_region
    _
  $region29: #{_critic_forward_impl.1} parent=0 // pred_fallthru
    _
  // Predicated region
  $region30: #{_critic_forward_impl.1} parent=0 // pred_check
    _
  $region31: #{_critic_forward_impl.1} parent=0 // pred_check_branch
    %1263 = sbr.rel (0) target = $region33
  $region32: #{_critic_forward_impl.1} parent=0 // pred_region
    _
  $region33: #{_critic_forward_impl.1} parent=0 // pred_fallthru
    _

</llo_original>
